<compile_context>
chip_gen: v7x
topology: tpu7x:2x2x1
jax: 0.10.0
libtpu: 0.0.40
codegen_flags: <defaults>
</compile_context>

<pallas_src>
import jax
import jax.numpy as jnp
import numpy as np
from jax.experimental import pallas as pl
from jax.experimental.pallas import tpu as pltpu

LATENT = 1024      # latent_dim (hard-wired to 1024 by the decoder, as in torch)
NUM_PRED = 128     # small test value (module default is 2048)
EPS = 1e-5
VMEM_LIMIT = 40 * 1024 * 1024   # < v7x 64 MiB physical; > v5e 16 MiB default scoped


# ---------------------------------------------------------------------------
# Kernels
# ---------------------------------------------------------------------------
def enc1_kernel(x_ref, w1a_ref, s1_ref, sh1_ref, w1b_ref, b1b_ref, gmax_ref):
    """Stage 1: per-point 3 -> 128 (BN+ReLU) -> 256, online max over points."""
    j = pl.program_id(2)
    x = x_ref[0]                                                   # (TN, 3) f32
    # K=3 contraction as VPU broadcast-FMAs (avoids a padded MXU matmul).
    h = (x[:, 0:1] * w1a_ref[0:1, :]
         + x[:, 1:2] * w1a_ref[1:2, :]
         + x[:, 2:3] * w1a_ref[2:3, :])                            # (TN, 128)
    h = jnp.maximum(h * s1_ref[...] + sh1_ref[...], 0.0)           # fused BN
    f = jnp.dot(h.astype(jnp.bfloat16), w1b_ref[...],
                preferred_element_type=jnp.float32) + b1b_ref[...]  # (TN, 256)

    @pl.when(j == 0)
    def _():
        gmax_ref[...] = jnp.full_like(gmax_ref, -jnp.inf)

    gmax_ref[0] = jnp.maximum(gmax_ref[0], jnp.max(f, axis=0, keepdims=True))


def enc2_kernel(x_ref, w1a_ref, s1_ref, sh1_ref, w1b_ref, b1b_ref,
                w2l_ref, s2_ref, gshift_ref, w2b_ref, b2b_ref, lat_ref):
    """Stage 2: recompute local features from x (no feat HBM roundtrip),
    concat-with-global expressed as `(f @ w2l)*s2 + gshift` where
    gshift = (g @ w2g)*s2 + sh2 is precomputed per batch, then 512 -> 1024
    and an online max over points."""
    j = pl.program_id(2)
    x = x_ref[0]                                                   # (TN, 3) f32
    h1 = (x[:, 0:1] * w1a_ref[0:1, :]
          + x[:, 1:2] * w1a_ref[1:2, :]
          + x[:, 2:3] * w1a_ref[2:3, :])                           # (TN, 128)
    h1 = jnp.maximum(h1 * s1_ref[...] + sh1_ref[...], 0.0)
    f = jnp.dot(h1.astype(jnp.bfloat16), w1b_ref[...],
                preferred_element_type=jnp.float32) + b1b_ref[...]  # (TN, 256)

    h2 = jnp.dot(f.astype(jnp.bfloat16), w2l_ref[...],
                 preferred_element_type=jnp.float32)               # (TN, 512)
    h2 = jnp.maximum(h2 * s2_ref[...] + gshift_ref[0], 0.0)
    z = jnp.dot(h2.astype(jnp.bfloat16), w2b_ref[...],
                preferred_element_type=jnp.float32) + b2b_ref[...]  # (TN, 1024)

    @pl.when(j == 0)
    def _():
        lat_ref[...] = jnp.full_like(lat_ref, -jnp.inf)

    lat_ref[0] = jnp.maximum(lat_ref[0], jnp.max(z, axis=0, keepdims=True))


def decoder_kernel(lat_ref, w1_ref, b1_ref, w2_ref, b2_ref, w3_ref, b3_ref,
                   o_ref, h_ref):
    """Fused 3-layer FC decoder.  Layers 1-2 run once at j==0 into VMEM
    scratch; layer-3 weight columns stream tile-by-tile across the grid."""
    j = pl.program_id(0)

    @pl.when(j == 0)
    def _():
        h1 = jnp.maximum(
            jnp.dot(lat_ref[...].astype(jnp.bfloat16), w1_ref[...],
                    preferred_element_type=jnp.float32) + b1_ref[...], 0.0)
        h_ref[...] = jnp.maximum(
            jnp.dot(h1.astype(jnp.bfloat16), w2_ref[...],
                    preferred_element_type=jnp.float32) + b2_ref[...], 0.0)

    o_ref[...] = jnp.dot(h_ref[...].astype(jnp.bfloat16), w3_ref[...],
                         preferred_element_type=jnp.float32) + b3_ref[...]


# ---------------------------------------------------------------------------
# Wrappers
# ---------------------------------------------------------------------------
def _col_tile(n, pref=512):
    for t in (pref, 384, 256, 128):
        if t <= n and n % t == 0:
            return t
    return n


def fc_forward(x, p, *, tn=1024):
    B, N, _ = x.shape
    num_pred3 = p["dw3"].shape[1]
    num_pred = num_pred3 // 3

    # ---- point-axis tiling; pad with copies of point 0 (max-invariant) ----
    tn = min(tn, N)
    n_pad = (-N) % tn
    if n_pad:
        x = jnp.concatenate(
            [x, jnp.broadcast_to(x[:, :1, :], (B, n_pad, 3))], axis=1)
    nt = (N + n_pad) // tn

    # Single-batch: split the point axis across both v7x TensorCores via an
    # extra "parallel" axis and combine the partial maxima in JAX.
    split = 2 if (B == 1 and nt % 2 == 0) else 1
    nt_per = nt // split

    x_map = lambda b, s, j: (b, s * nt_per + j, 0)
    const = lambda b, s, j: (0, 0)

    enc_params = pltpu.CompilerParams(
        dimension_semantics=("parallel", "parallel", "arbitrary"),
        vmem_limit_bytes=VMEM_LIMIT)

    # ---- stage 1: global feature max (only (B,split,256) goes back to HBM) --
    gmax = pl.pallas_call(
        enc1_kernel,
        out_shape=jax.ShapeDtypeStruct((B, split, 256), jnp.float32),
        grid=(B, split, nt_per),
        in_specs=[
            pl.BlockSpec((1, tn, 3), x_map),
            pl.BlockSpec((3, 128), const),
            pl.BlockSpec((1, 128), const),
            pl.BlockSpec((1, 128), const),
            pl.BlockSpec((128, 256), const),
            pl.BlockSpec((1, 256), const),
        ],
        out_specs=pl.BlockSpec((1, 1, 256), lambda b, s, j: (b, s, 0)),
        compiler_params=enc_params,
    )(x, p["w1a"], p["s1"], p["sh1"], p["w1b"], p["b1b"])
    g = gmax.max(axis=1)                                         # (B, 256)

    # ---- hoist the grid-invariant global-feature matmul out of stage 2 ----
    gshift = ((g @ p["w2g"]) * p["s2"] + p["sh2"]).reshape(B, 1, 512)

    # ---- stage 2: 512 -> 512 (BN+ReLU) -> 1024, online max over points ----
    lat_part = pl.pallas_call(
        enc2_kernel,
        out_shape=jax.ShapeDtypeStruct((B, split, LATENT), jnp.float32),
        grid=(B, split, nt_per),
        in_specs=[
            pl.BlockSpec((1, tn, 3), x_map),
            pl.BlockSpec((3, 128), const),
            pl.BlockSpec((1, 128), const),
            pl.BlockSpec((1, 128), const),
            pl.BlockSpec((128, 256), const),
            pl.BlockSpec((1, 256), const),
            pl.BlockSpec((256, 512), const),
            pl.BlockSpec((1, 512), const),
            pl.BlockSpec((1, 1, 512), lambda b, s, j: (b, 0, 0)),
            pl.BlockSpec((512, LATENT), const),
            pl.BlockSpec((1, LATENT), const),
        ],
        out_specs=pl.BlockSpec((1, 1, LATENT), lambda b, s, j: (b, s, 0)),
        compiler_params=enc_params,
    )(x, p["w1a"], p["s1"], p["sh1"], p["w1b"], p["b1b"],
      p["w2l"], p["s2"], gshift, p["w2b"], p["b2b"])
    lat = lat_part.max(axis=1)                                   # (B, LATENT)

    # ---- decoder: single fused pallas_call, dw3 column tiles stream ----
    tc3 = _col_tile(num_pred3)
    nt3 = num_pred3 // tc3
    out_flat = pl.pallas_call(
        decoder_kernel,
        out_shape=jax.ShapeDtypeStruct((B, num_pred3), jnp.float32),
        grid=(nt3,),
        in_specs=[
            pl.BlockSpec((B, LATENT), lambda j: (0, 0)),
            pl.BlockSpec((LATENT, 1024), lambda j: (0, 0)),   # dw1 (fetched once)
            pl.BlockSpec((1, 1024), lambda j: (0, 0)),
            pl.BlockSpec((1024, 1024), lambda j: (0, 0)),     # dw2 (fetched once)
            pl.BlockSpec((1, 1024), lambda j: (0, 0)),
            pl.BlockSpec((1024, tc3), lambda j: (0, j)),      # dw3 columns stream
            pl.BlockSpec((1, tc3), lambda j: (0, j)),
        ],
        out_specs=pl.BlockSpec((B, tc3), lambda j: (0, j)),
        scratch_shapes=[pltpu.VMEM((B, 1024), jnp.float32)],
        compiler_params=pltpu.CompilerParams(
            dimension_semantics=("arbitrary",),   # h scratch written at j==0
            vmem_limit_bytes=VMEM_LIMIT),
    )(lat, p["dw1"], p["db1"], p["dw2"], p["db2"], p["dw3"], p["db3"])

    # view(B, 3, num_pred).transpose(1, 2)
    return out_flat.reshape(B, 3, num_pred).transpose(0, 2, 1)


# ---------------------------------------------------------------------------
# Deterministic parameter init (synthetic; BN folded to scale/shift).
# Matmul weights are stored in bf16 ONCE here (MXU dtype, halves weight DMA).
# ---------------------------------------------------------------------------
def init_params(key, latent_dim=LATENT, num_pred=NUM_PRED):
    ks = jax.random.split(key, 24)
    dense = lambda k, fi, fo: (jax.random.normal(k, (fi, fo), jnp.float32)
                               / np.sqrt(fi))
    bias = lambda k, n: 0.1 * jax.random.normal(k, (1, n), jnp.float32)

    def bn_fold(kg, kb, km, kv, conv_bias, c):
        gamma = 1.0 + 0.1 * jax.random.normal(kg, (1, c), jnp.float32)
        beta = 0.1 * jax.random.normal(kb, (1, c), jnp.float32)
        mean = 0.1 * jax.random.normal(km, (1, c), jnp.float32)
        var = jax.random.uniform(kv, (1, c), jnp.float32, 0.5, 1.5)
        scale = gamma / jnp.sqrt(var + EPS)
        shift = (conv_bias - mean) * scale + beta
        return scale, shift

    # conv1: Conv1d(3,128,1) + BN(128) + ReLU + Conv1d(128,256,1)
    w1a, b1a = dense(ks[0], 3, 128), bias(ks[1], 128)
    s1, sh1 = bn_fold(ks[2], ks[3], ks[4], ks[5], b1a, 128)
    w1b, b1b = dense(ks[6], 128, 256), bias(ks[7], 256)

    # conv2: Conv1d(512,512,1) + BN(512) + ReLU + Conv1d(512,1024,1)
    w2a, b2a = dense(ks[8], 512, 512), bias(ks[9], 512)
    s2, sh2 = bn_fold(ks[10], ks[11], ks[12], ks[13], b2a, 512)
    w2g, w2l = w2a[:256], w2a[256:]        # concat order: [global, local]
    w2b, b2b = dense(ks[14], 512, latent_dim), bias(ks[15], latent_dim)

    # decoder: Linear(1024,1024) ReLU Linear(1024,1024) ReLU Linear(1024,3*num_pred)
    dw1, db1 = dense(ks[16], 1024, 1024), bias(ks[17], 1024)
    dw2, db2 = dense(ks[18], 1024, 1024), bias(ks[19], 1024)
    dw3, db3 = dense(ks[20], 1024, num_pred * 3), bias(ks[21], num_pred * 3)

    bf = lambda a: a.astype(jnp.bfloat16)
    return dict(w1a=w1a, s1=s1, sh1=sh1, w1b=bf(w1b), b1b=b1b,
                w2g=w2g, w2l=bf(w2l), s2=s2, sh2=sh2, w2b=bf(w2b), b2b=b2b,
                dw1=bf(dw1), db1=db1, dw2=bf(dw2), db2=db2, dw3=bf(dw3), db3=db3)


# ---------------------------------------------------------------------------
# Pure-JAX reference (same eval-mode BN fold; bf16 weights upcast to f32 so
# the only divergence is the kernel's bf16 activation casts before the MXU).
# ---------------------------------------------------------------------------
def fc_reference(x, p, num_pred):
    f32 = lambda a: a.astype(jnp.float32)
    B = x.shape[0]
    h = jnp.maximum((x @ p["w1a"]) * p["s1"] + p["sh1"], 0.0)
    f = h @ f32(p["w1b"]) + p["b1b"]                    # (B, N, 256)
    g = f.max(axis=1, keepdims=True)                    # (B, 1, 256)
    h2 = g @ p["w2g"] + f @ f32(p["w2l"])
    h2 = jnp.maximum(h2 * p["s2"] + p["sh2"], 0.0)
    z = h2 @ f32(p["w2b"]) + p["b2b"]                   # (B, N, 1024)
    lat = z.max(axis=1)                                 # (B, 1024)
    d = jnp.maximum(lat @ f32(p["dw1"]) + p["db1"], 0.0)
    d = jnp.maximum(d @ f32(p["dw2"]) + p["db2"], 0.0)
    o = d @ f32(p["dw3"]) + p["db3"]
    return o.reshape(B, 3, num_pred).transpose(0, 2, 1)


if __name__ == "__main__":
    key = jax.random.PRNGKey(0)
    kx, kp = jax.random.split(key)
    B, N = 2, 64
    x = jax.random.normal(kx, (B, N, 3), jnp.float32)
    params = init_params(kp)

    out = fc_forward(x, params)
    out = jax.block_until_ready(out)
    assert out.shape == (B, NUM_PRED, 3), out.shape

    ref = fc_reference(x, params, NUM_PRED)
    err = float(jnp.max(jnp.abs(out - ref)))
    assert np.allclose(np.asarray(out), np.asarray(ref), rtol=0.1, atol=0.1), err
    print("KERNEL_OK")
</pallas_src>

<mosaic_0001>
module attributes {stable_mosaic.version = 11 : i64} {
  func.func @enc1_kernel(%arg0: i32, %arg1: i32, %arg2: i32, %arg3: memref<1x64x3xf32, #tpu.memory_space<vmem>>, %arg4: memref<3x128xf32, #tpu.memory_space<vmem>>, %arg5: memref<1x128xf32, #tpu.memory_space<vmem>>, %arg6: memref<1x128xf32, #tpu.memory_space<vmem>>, %arg7: memref<128x256xbf16, #tpu.memory_space<vmem>>, %arg8: memref<1x256xf32, #tpu.memory_space<vmem>>, %arg9: memref<1x1x256xf32, #tpu.memory_space<vmem>>) attributes {dimension_semantics = [#tpu.dimension_semantics<parallel>, #tpu.dimension_semantics<parallel>, #tpu.dimension_semantics<arbitrary>], iteration_bounds = array<i64: 2, 1, 1>, scalar_prefetch = 0 : i64, scratch_operands = 0 : i64, tpu.core_type = #tpu.core_type<tc>, window_params = [{transform_indices = @transform_0, window_bounds = array<i64: 1, 64, 3>}, {pipeline_mode = #tpu.pipeline_mode<synchronous>, transform_indices = @transform_1, window_bounds = array<i64: 3, 128>}, {pipeline_mode = #tpu.pipeline_mode<synchronous>, transform_indices = @transform_2, window_bounds = array<i64: 1, 128>}, {pipeline_mode = #tpu.pipeline_mode<synchronous>, transform_indices = @transform_3, window_bounds = array<i64: 1, 128>}, {pipeline_mode = #tpu.pipeline_mode<synchronous>, transform_indices = @transform_4, window_bounds = array<i64: 128, 256>}, {pipeline_mode = #tpu.pipeline_mode<synchronous>, transform_indices = @transform_5, window_bounds = array<i64: 1, 256>}, {transform_indices = @transform_6, window_bounds = array<i64: 1, 1, 256>}]} {
    %c0 = arith.constant 0 : index
    %c0_0 = arith.constant 0 : index
    %c0_1 = arith.constant 0 : index
    %0 = vector.load %arg3[%c0, %c0_0, %c0_1] : memref<1x64x3xf32, #tpu.memory_space<vmem>>, vector<1x64x3xf32>
    %1 = vector.shape_cast %0 : vector<1x64x3xf32> to vector<64x3xf32>
    %2 = vector.extract_strided_slice %1 {offsets = [0, 0], sizes = [64, 1], strides = [1, 1]} : vector<64x3xf32> to vector<64x1xf32>
    %c0_2 = arith.constant 0 : index
    %c0_3 = arith.constant 0 : index
    %3 = vector.load %arg4[%c0_2, %c0_3] : memref<3x128xf32, #tpu.memory_space<vmem>>, vector<1x128xf32>
    %4 = vector.broadcast %2 : vector<64x1xf32> to vector<64x128xf32>
    %5 = vector.broadcast %3 : vector<1x128xf32> to vector<64x128xf32>
    %6 = arith.mulf %4, %5 : vector<64x128xf32>
    %7 = vector.extract_strided_slice %1 {offsets = [0, 1], sizes = [64, 1], strides = [1, 1]} : vector<64x3xf32> to vector<64x1xf32>
    %c1 = arith.constant 1 : index
    %c0_4 = arith.constant 0 : index
    %8 = vector.load %arg4[%c1, %c0_4] : memref<3x128xf32, #tpu.memory_space<vmem>>, vector<1x128xf32>
    %9 = vector.broadcast %7 : vector<64x1xf32> to vector<64x128xf32>
    %10 = vector.broadcast %8 : vector<1x128xf32> to vector<64x128xf32>
    %11 = arith.mulf %9, %10 : vector<64x128xf32>
    %12 = arith.addf %6, %11 : vector<64x128xf32>
    %13 = vector.extract_strided_slice %1 {offsets = [0, 2], sizes = [64, 1], strides = [1, 1]} : vector<64x3xf32> to vector<64x1xf32>
    %c2 = arith.constant 2 : index
    %c0_5 = arith.constant 0 : index
    %14 = vector.load %arg4[%c2, %c0_5] : memref<3x128xf32, #tpu.memory_space<vmem>>, vector<1x128xf32>
    %15 = vector.broadcast %13 : vector<64x1xf32> to vector<64x128xf32>
    %16 = vector.broadcast %14 : vector<1x128xf32> to vector<64x128xf32>
    %17 = arith.mulf %15, %16 : vector<64x128xf32>
    %18 = arith.addf %12, %17 : vector<64x128xf32>
    %c0_6 = arith.constant 0 : index
    %c0_7 = arith.constant 0 : index
    %19 = vector.load %arg5[%c0_6, %c0_7] : memref<1x128xf32, #tpu.memory_space<vmem>>, vector<1x128xf32>
    %20 = vector.broadcast %19 : vector<1x128xf32> to vector<64x128xf32>
    %21 = arith.mulf %18, %20 : vector<64x128xf32>
    %c0_8 = arith.constant 0 : index
    %c0_9 = arith.constant 0 : index
    %22 = vector.load %arg6[%c0_8, %c0_9] : memref<1x128xf32, #tpu.memory_space<vmem>>, vector<1x128xf32>
    %23 = vector.broadcast %22 : vector<1x128xf32> to vector<64x128xf32>
    %24 = arith.addf %21, %23 : vector<64x128xf32>
    %cst = arith.constant 0.000000e+00 : f32
    %25 = vector.broadcast %cst : f32 to vector<64x128xf32>
    %26 = arith.maximumf %24, %25 : vector<64x128xf32>
    %27 = arith.truncf %26 : vector<64x128xf32> to vector<64x128xbf16>
    %c0_10 = arith.constant 0 : index
    %c0_11 = arith.constant 0 : index
    %28 = vector.load %arg7[%c0_10, %c0_11] : memref<128x256xbf16, #tpu.memory_space<vmem>>, vector<128x256xbf16>
    %cst_12 = arith.constant dense<0.000000e+00> : vector<64x256xf32>
    %29 = tpu.matmul %27, %28, %cst_12 {dimension_numbers = #tpu.dot_dimension_numbers<[1], [0], [0], [1], [0, 0, 1, 1], [], []>} : vector<64x128xbf16>, vector<128x256xbf16>, vector<64x256xf32> -> vector<64x256xf32>
    %c0_13 = arith.constant 0 : index
    %c0_14 = arith.constant 0 : index
    %30 = vector.load %arg8[%c0_13, %c0_14] : memref<1x256xf32, #tpu.memory_space<vmem>>, vector<1x256xf32>
    %31 = vector.broadcast %30 : vector<1x256xf32> to vector<64x256xf32>
    %32 = arith.addf %29, %31 : vector<64x256xf32>
    %c0_i32 = arith.constant 0 : i32
    %33 = arith.cmpi eq, %arg2, %c0_i32 : i32
    %34 = arith.extui %33 : i1 to i32
    %c0_i32_15 = arith.constant 0 : i32
    %35 = arith.cmpi ne, %34, %c0_i32_15 : i32
    scf.if %35 {
      %cst_23 = arith.constant 0xFF800000 : f32
      %44 = vector.broadcast %cst_23 : f32 to vector<1x1x256xf32>
      %c0_24 = arith.constant 0 : index
      %c0_25 = arith.constant 0 : index
      %c0_26 = arith.constant 0 : index
      %45 = vector.load %arg9[%c0_24, %c0_25, %c0_26] : memref<1x1x256xf32, #tpu.memory_space<vmem>>, vector<1x1x256xf32>
      tpu.vector_store %arg9[%c0_24, %c0_25, %c0_26], %44 {strides = array<i32>} : memref<1x1x256xf32, #tpu.memory_space<vmem>>, vector<1x1x256xf32>,
    } else {
    }
    %c0_16 = arith.constant 0 : index
    %c0_17 = arith.constant 0 : index
    %c0_18 = arith.constant 0 : index
    %36 = vector.load %arg9[%c0_16, %c0_17, %c0_18] : memref<1x1x256xf32, #tpu.memory_space<vmem>>, vector<1x1x256xf32>
    %37 = vector.shape_cast %36 : vector<1x1x256xf32> to vector<1x256xf32>
    %cst_19 = arith.constant dense<0xFF800000> : vector<256xf32>
    %38 = vector.multi_reduction <maximumf>, %32, %cst_19 [0] : vector<64x256xf32> to vector<256xf32>
    %39 = vector.shape_cast %38 : vector<256xf32> to vector<1x256xf32>
    %40 = arith.maximumf %37, %39 : vector<1x256xf32>
    %c0_20 = arith.constant 0 : index
    %c0_21 = arith.constant 0 : index
    %c0_22 = arith.constant 0 : index
    %41 = vector.load %arg9[%c0_20, %c0_21, %c0_22] : memref<1x1x256xf32, #tpu.memory_space<vmem>>, vector<1x1x256xf32>
    %42 = vector.shape_cast %41 : vector<1x1x256xf32> to vector<1x256xf32>
    %43 = vector.shape_cast %40 : vector<1x256xf32> to vector<1x1x256xf32>
    tpu.vector_store %arg9[%c0_20, %c0_21, %c0_22], %43 {strides = array<i32>} : memref<1x1x256xf32, #tpu.memory_space<vmem>>, vector<1x1x256xf32>,
    return
  }
  func.func @transform_0(%arg0: i32, %arg1: i32, %arg2: i32) -> (i32, i32, i32) {
    %c1_i32 = arith.constant 1 : i32
    %0 = arith.muli %arg1, %c1_i32 : i32
    %1 = arith.addi %0, %arg2 : i32
    %c0_i32 = arith.constant 0 : i32
    %c0_i32_0 = arith.constant 0 : i32
    return %arg0, %1, %c0_i32 : i32, i32, i32
  }
  func.func @transform_1(%arg0: i32, %arg1: i32, %arg2: i32) -> (i32, i32) {
    %c0_i32 = arith.constant 0 : i32
    %c0_i32_0 = arith.constant 0 : i32
    %c0_i32_1 = arith.constant 0 : i32
    return %c0_i32, %c0_i32_0 : i32, i32
  }
  func.func @transform_2(%arg0: i32, %arg1: i32, %arg2: i32) -> (i32, i32) {
    %c0_i32 = arith.constant 0 : i32
    %c0_i32_0 = arith.constant 0 : i32
    %c0_i32_1 = arith.constant 0 : i32
    return %c0_i32, %c0_i32_0 : i32, i32
  }
  func.func @transform_3(%arg0: i32, %arg1: i32, %arg2: i32) -> (i32, i32) {
    %c0_i32 = arith.constant 0 : i32
    %c0_i32_0 = arith.constant 0 : i32
    %c0_i32_1 = arith.constant 0 : i32
    return %c0_i32, %c0_i32_0 : i32, i32
  }
  func.func @transform_4(%arg0: i32, %arg1: i32, %arg2: i32) -> (i32, i32) {
    %c0_i32 = arith.constant 0 : i32
    %c0_i32_0 = arith.constant 0 : i32
    %c0_i32_1 = arith.constant 0 : i32
    return %c0_i32, %c0_i32_0 : i32, i32
  }
  func.func @transform_5(%arg0: i32, %arg1: i32, %arg2: i32) -> (i32, i32) {
    %c0_i32 = arith.constant 0 : i32
    %c0_i32_0 = arith.constant 0 : i32
    %c0_i32_1 = arith.constant 0 : i32
    return %c0_i32, %c0_i32_0 : i32, i32
  }
  func.func @transform_6(%arg0: i32, %arg1: i32, %arg2: i32) -> (i32, i32, i32) {
    %c0_i32 = arith.constant 0 : i32
    %c0_i32_0 = arith.constant 0 : i32
    return %arg0, %arg1, %c0_i32 : i32, i32, i32
  }
}

</mosaic_0001>

<llo_original>
// kernel: tpu_custom_call.1
$region0: #{tpu_custom_call.1}
  #allocation0 [shape = 'u32[]', space=smem, size = 0x4, offset = 0x4, fixed_abs, tag = 'smem constant byte address 0x4 - core index']
  #allocation1 [shape = 'u32[144,128]{1,0:T(1,128)}', space=vmem, size = 0x12000, scoped, tag = 'internal scratch']
  %s0 = inlined_call_operand.vmem [shape: f32[2,64,3], index: 0, kind: input, shape index: {}]
  %s1 = inlined_call_operand.vmem [shape: f32[3,128], index: 1, kind: input, shape index: {}]
  %s2 = inlined_call_operand.vmem [shape: f32[1,128], index: 2, kind: input, shape index: {}]
  %s3 = inlined_call_operand.vmem [shape: f32[1,128], index: 3, kind: input, shape index: {}]
  %s4 = inlined_call_operand.vmem [shape: bf16[128,256], index: 4, kind: input, shape index: {}]
  %s5 = inlined_call_operand.vmem [shape: f32[1,256], index: 5, kind: input, shape index: {}]
  %s6 = inlined_call_operand.hbm [shape: f32[2,1,256], index: 6, kind: output, shape index: {}]
  %s7 = sld [smem:[#allocation0]]
  $region61: #{tpu_custom_call.1} parent=0
    _
  %s9 = ssub.s32 1, %s7
  %s10 = scalar_select 0, %s9, %s7
  $region1: #{tpu_custom_call.1} parent=0
    #allocation2 [shape = 'u8[2048]{0}', space=vmem, size = 0x800, scoped, tag = 'output window, operand 0']
    #allocation3 [shape = 's32[2]{0}', space=sflag, size = 0x8, scoped, tag = 'scoped memory for tpu_custom_call.1']
    %11 = vsyncpa [#allocation3], 0
    %s12 = scalar_lea.sflag [#allocation3], 1
    %13 = vsyncpa %s12, 0
    loop: start=0, step=1, limit=4
    $region2: #{tpu_custom_call.1} parent=1 // loop_pre_header
      _
    $region3: #{tpu_custom_call.1} parent=1 // loop_header
      %s15 = sphi 0, %s19
      %p16 = scmp.ge.s32.totalorder %s15, 4
      %s22 = sphi 0, %s41
      %s23 = sphi 0, %s37
      %s24 = sphi 0, %s33
      %s25 = sphi 0, %s22
      %s26 = sphi 0, %s23
      %s27 = sphi 0, %s24
      %s28 = sphi 0, %s25
      %s29 = sphi 0, %s26
      %s30 = sphi 0, %s27
      %s48 = sphi 0, %s50
      %s51 = sphi 0, %s48
      %s52 = sphi 0, %s51
      %s68 = sphi 0, %s52
      %s72 = sphi 0, %s72
      %s74 = sphi 0, %s72
      %s75 = sphi 0, %s74
      %s89 = sphi 0, %s75
      %s93 = sphi 0, %s93
      %s95 = sphi 0, %s93
      %s96 = sphi 0, %s95
      %s110 = sphi 0, %s96
      %s114 = sphi 0, %s114
      %s116 = sphi 0, %s114
      %s117 = sphi 0, %s116
      %s131 = sphi 0, %s117
      %s135 = sphi 0, %s135
      %s137 = sphi 0, %s135
      %s138 = sphi 0, %s137
      %s152 = sphi 0, %s138
      %s156 = sphi 0, %s156
      %s158 = sphi 0, %s156
      %s159 = sphi 0, %s158
      %s173 = sphi 0, %s159
      %s181 = sphi 0, %s183
      %s184 = sphi 0, %s181
      %s185 = sphi 0, %s184
      %s201 = sphi 0, %s185
    $region4: #{tpu_custom_call.1} parent=1 // loop_header_branch
      %18 = sbr.rel (%p16) target = $region8
    $region5: #{tpu_custom_call.1} parent=1 // loop_body
      %s20 = ssub.s32 %s15, 1
      %s21 = ssub.s32 %s15, 2
      %s31 = sadd.s32 1, %s24
      %p32 = scmp.ge.s32.totalorder %s31, 1
      %s33 = scalar_select %p32, 0, %s31
      %s34 = sadd.s32 1, %s23
      %s35 = scalar_select %p32, %s34, %s23
      %p36 = scmp.ge.s32.totalorder %s35, 1
      %s37 = scalar_select %p36, 0, %s35
      %s38 = sadd.s32 1, %s22
      %s39 = scalar_select %p36, %s38, %s22
      %p40 = scmp.ge.s32.totalorder %s39, 2
      %s41 = scalar_select %p40, 0, %s39
      %s42 = sadd.s32 %s23, %s24
      %s43 = sadd.s32 %s37, %s33
      %s44 = ssub.s32 %s22, %s41
      %s45 = ssub.s32 %s42, %s43
      %s46 = sor.u32 %s44, %s45
      %p47 = scmp.eq.s32.totalorder %s46, 0
      %s49 = sadd.s32 %s48, 1
      %s50 = scalar_select %p47, %s48, %s49
      %p53 = pneg %p47
      %p54 = scmp.eq.s32.totalorder %s15, 1
      %p55 = por %p53, %p54
      %p56 = scmp.ne.s32.totalorder %s48, %s51
      %p57 = scmp.eq.s32.totalorder %s15, 0
      %p58 = por %p56, %p57
      %p59 = scmp.ne.s32.totalorder %s48, %s51
      %p60 = scmp.eq.s32.totalorder %s20, 1
      %p61 = por %p59, %p60
      %p62 = scmp.ne.s32.totalorder %s51, %s52
      %p63 = scmp.eq.s32.totalorder %s20, 0
      %p64 = por %p62, %p63
      %p65 = scmp.ne.s32.totalorder %s51, %s52
      %p66 = scmp.eq.s32.totalorder %s21, 1
      %p67 = por %p65, %p66
      %p69 = scmp.ne.s32.totalorder %s52, %s68
      %p70 = scmp.eq.s32.totalorder %s21, 0
      %p71 = por %p69, %p70
      %s73 = sadd.s32 %s72, 1
      %p76 = scmp.eq.s32.totalorder %s15, 1
      %p77 = scmp.ne.s32.totalorder %s72, %s74
      %p78 = scmp.eq.s32.totalorder %s15, 0
      %p79 = por %p77, %p78
      %p80 = scmp.ne.s32.totalorder %s72, %s74
      %p81 = scmp.eq.s32.totalorder %s20, 1
      %p82 = por %p80, %p81
      %p83 = scmp.ne.s32.totalorder %s74, %s75
      %p84 = scmp.eq.s32.totalorder %s20, 0
      %p85 = por %p83, %p84
      %p86 = scmp.ne.s32.totalorder %s74, %s75
      %p87 = scmp.eq.s32.totalorder %s21, 1
      %p88 = por %p86, %p87
      %p90 = scmp.ne.s32.totalorder %s75, %s89
      %p91 = scmp.eq.s32.totalorder %s21, 0
      %p92 = por %p90, %p91
      %s94 = sadd.s32 %s93, 1
      %p97 = scmp.eq.s32.totalorder %s15, 1
      %p98 = scmp.ne.s32.totalorder %s93, %s95
      %p99 = scmp.eq.s32.totalorder %s15, 0
      %p100 = por %p98, %p99
      %p101 = scmp.ne.s32.totalorder %s93, %s95
      %p102 = scmp.eq.s32.totalorder %s20, 1
      %p103 = por %p101, %p102
      %p104 = scmp.ne.s32.totalorder %s95, %s96
      %p105 = scmp.eq.s32.totalorder %s20, 0
      %p106 = por %p104, %p105
      %p107 = scmp.ne.s32.totalorder %s95, %s96
      %p108 = scmp.eq.s32.totalorder %s21, 1
      %p109 = por %p107, %p108
      %p111 = scmp.ne.s32.totalorder %s96, %s110
      %p112 = scmp.eq.s32.totalorder %s21, 0
      %p113 = por %p111, %p112
      %s115 = sadd.s32 %s114, 1
      %p118 = scmp.eq.s32.totalorder %s15, 1
      %p119 = scmp.ne.s32.totalorder %s114, %s116
      %p120 = scmp.eq.s32.totalorder %s15, 0
      %p121 = por %p119, %p120
      %p122 = scmp.ne.s32.totalorder %s114, %s116
      %p123 = scmp.eq.s32.totalorder %s20, 1
      %p124 = por %p122, %p123
      %p125 = scmp.ne.s32.totalorder %s116, %s117
      %p126 = scmp.eq.s32.totalorder %s20, 0
      %p127 = por %p125, %p126
      %p128 = scmp.ne.s32.totalorder %s116, %s117
      %p129 = scmp.eq.s32.totalorder %s21, 1
      %p130 = por %p128, %p129
      %p132 = scmp.ne.s32.totalorder %s117, %s131
      %p133 = scmp.eq.s32.totalorder %s21, 0
      %p134 = por %p132, %p133
      %s136 = sadd.s32 %s135, 1
      %p139 = scmp.eq.s32.totalorder %s15, 1
      %p140 = scmp.ne.s32.totalorder %s135, %s137
      %p141 = scmp.eq.s32.totalorder %s15, 0
      %p142 = por %p140, %p141
      %p143 = scmp.ne.s32.totalorder %s135, %s137
      %p144 = scmp.eq.s32.totalorder %s20, 1
      %p145 = por %p143, %p144
      %p146 = scmp.ne.s32.totalorder %s137, %s138
      %p147 = scmp.eq.s32.totalorder %s20, 0
      %p148 = por %p146, %p147
      %p149 = scmp.ne.s32.totalorder %s137, %s138
      %p150 = scmp.eq.s32.totalorder %s21, 1
      %p151 = por %p149, %p150
      %p153 = scmp.ne.s32.totalorder %s138, %s152
      %p154 = scmp.eq.s32.totalorder %s21, 0
      %p155 = por %p153, %p154
      %s157 = sadd.s32 %s156, 1
      %p160 = scmp.eq.s32.totalorder %s15, 1
      %p161 = scmp.ne.s32.totalorder %s156, %s158
      %p162 = scmp.eq.s32.totalorder %s15, 0
      %p163 = por %p161, %p162
      %p164 = scmp.ne.s32.totalorder %s156, %s158
      %p165 = scmp.eq.s32.totalorder %s20, 1
      %p166 = por %p164, %p165
      %p167 = scmp.ne.s32.totalorder %s158, %s159
      %p168 = scmp.eq.s32.totalorder %s20, 0
      %p169 = por %p167, %p168
      %p170 = scmp.ne.s32.totalorder %s158, %s159
      %p171 = scmp.eq.s32.totalorder %s21, 1
      %p172 = por %p170, %p171
      %p174 = scmp.ne.s32.totalorder %s159, %s173
      %p175 = scmp.eq.s32.totalorder %s21, 0
      %p176 = por %p174, %p175
      %s177 = ssub.s32 %s22, %s41
      %s178 = ssub.s32 %s23, %s37
      %s179 = sor.u32 %s177, %s178
      %p180 = scmp.eq.s32.totalorder %s179, 0
      %s182 = sadd.s32 %s181, 1
      %s183 = scalar_select %p180, %s181, %s182
      %p186 = pneg %p180
      %p187 = scmp.eq.s32.totalorder %s15, 1
      %p188 = por %p186, %p187
      %p189 = scmp.ne.s32.totalorder %s181, %s184
      %p190 = scmp.eq.s32.totalorder %s15, 0
      %p191 = por %p189, %p190
      %p192 = scmp.ne.s32.totalorder %s181, %s184
      %p193 = scmp.eq.s32.totalorder %s20, 1
      %p194 = por %p192, %p193
      %p195 = scmp.ne.s32.totalorder %s184, %s185
      %p196 = scmp.eq.s32.totalorder %s20, 0
      %p197 = por %p195, %p196
      %p198 = scmp.ne.s32.totalorder %s184, %s185
      %p199 = scmp.eq.s32.totalorder %s21, 1
      %p200 = por %p198, %p199
      %p202 = scmp.ne.s32.totalorder %s185, %s201
      %p203 = scmp.eq.s32.totalorder %s21, 0
      %p204 = por %p202, %p203
      %p205 = scmp.le.s32.totalorder 1, %s15
      %p206 = scmp.lt.s32.totalorder %s15, 3
      %p207 = pnand %p205, %p206
      %p208 = pneg %p207
      // Predicated region
      $region9: #{tpu_custom_call.1} parent=5 // pred_check
        _
      $region10: #{tpu_custom_call.1} parent=5 // pred_check_branch
        %210 = sbr.rel (%p207) target = $region12
      $region11: #{tpu_custom_call.1} parent=5 // pred_region
        %s211 = ssub.s32 %s15, 1
        // Predicated region
        $region13: #{tpu_custom_call.1} parent=11 // pred_check
          %p212 = pneg %p85
        $region14: #{tpu_custom_call.1} parent=11 // pred_check_branch
          %214 = sbr.rel (%p212) target = $region16
        $region15: #{tpu_custom_call.1} parent=11 // pred_region
          _
        $region16: #{tpu_custom_call.1} parent=11 // pred_fallthru
          _
        // Predicated region
        $region17: #{tpu_custom_call.1} parent=11 // pred_check
          %p215 = pneg %p106
        $region18: #{tpu_custom_call.1} parent=11 // pred_check_branch
          %217 = sbr.rel (%p215) target = $region20
        $region19: #{tpu_custom_call.1} parent=11 // pred_region
          _
        $region20: #{tpu_custom_call.1} parent=11 // pred_fallthru
          _
        // Predicated region
        $region21: #{tpu_custom_call.1} parent=11 // pred_check
          %p218 = pneg %p127
        $region22: #{tpu_custom_call.1} parent=11 // pred_check_branch
          %220 = sbr.rel (%p218) target = $region24
        $region23: #{tpu_custom_call.1} parent=11 // pred_region
          _
        $region24: #{tpu_custom_call.1} parent=11 // pred_fallthru
          _
        // Predicated region
        $region25: #{tpu_custom_call.1} parent=11 // pred_check
          %p221 = pneg %p148
        $region26: #{tpu_custom_call.1} parent=11 // pred_check_branch
          %223 = sbr.rel (%p221) target = $region28
        $region27: #{tpu_custom_call.1} parent=11 // pred_region
          _
        $region28: #{tpu_custom_call.1} parent=11 // pred_fallthru
          _
        // Predicated region
        $region29: #{tpu_custom_call.1} parent=11 // pred_check
          %p224 = pneg %p169
        $region30: #{tpu_custom_call.1} parent=11 // pred_check_branch
          %226 = sbr.rel (%p224) target = $region32
        $region31: #{tpu_custom_call.1} parent=11 // pred_region
          _
        $region32: #{tpu_custom_call.1} parent=11 // pred_fallthru
          _
      $region12: #{tpu_custom_call.1} parent=5 // pred_fallthru
        _
      %p227 = scmp.lt.s32.totalorder %s15, 2
      // Predicated region
      $region33: #{tpu_custom_call.1} parent=5 // pred_check
        %p228 = pneg %p227
      $region34: #{tpu_custom_call.1} parent=5 // pred_check_branch
        %230 = sbr.rel (%p228) target = $region36
      $region35: #{tpu_custom_call.1} parent=5 // pred_region
        // Predicated region
        $region37: #{tpu_custom_call.1} parent=35 // pred_check
          %p231 = pneg %p58
        $region38: #{tpu_custom_call.1} parent=35 // pred_check_branch
          %233 = sbr.rel (%p231) target = $region40
        $region39: #{tpu_custom_call.1} parent=35 // pred_region
          %s234 = sadd.s32 %s23, %s24
          %s235 = smul.u32 8, %s234
          %p236 = scmp.lt.s32.totalorder %s22, 1
          %s237 = scalar_select %p236, %s22, 1
          %p238 = scmp.lt.s32.totalorder %s235, 7
          %s239 = scalar_select %p238, %s235, 7
          %s240 = smul.addr %s237, 8
          %s241 = sadd.s32 %s239, %s240
          %s242 = smul.addr %s241, 8
          %s243 = scalar_lea.vmem %s0, %s242
          %s244 = sadd.s32 %s23, %s24
          %s245 = smul.u32 8, %s244
        $region40: #{tpu_custom_call.1} parent=35 // pred_fallthru
          _
      $region36: #{tpu_custom_call.1} parent=5 // pred_fallthru
        _
      %p246 = scmp.le.s32.totalorder 1, %s15
      %p247 = scmp.lt.s32.totalorder %s15, 3
      %p248 = pnand %p246, %p247
      %p249 = pneg %p248
      // Predicated region
      $region41: #{tpu_custom_call.1} parent=5 // pred_check
        _
      $region42: #{tpu_custom_call.1} parent=5 // pred_check_branch
        %251 = sbr.rel (%p248) target = $region44
      $region43: #{tpu_custom_call.1} parent=5 // pred_region
        %s252 = ssub.s32 %s15, 1
        %s253 = sadd.s32 %s26, %s27
        %s254 = smul.u32 8, %s253
        %p255 = scmp.lt.s32.totalorder %s25, 1
        %s256 = scalar_select %p255, %s25, 1
        %p257 = scmp.lt.s32.totalorder %s254, 7
        %s258 = scalar_select %p257, %s254, 7
        %s259 = smul.addr %s256, 8
        %s260 = sadd.s32 %s258, %s259
        %s261 = smul.addr %s260, 8
        %s262 = scalar_lea.vmem %s0, %s261
        %p263 = pneg %p64
        %p264 = pneg %p61
        %p265 = pneg %p85
        %p266 = pneg %p82
        %p267 = pneg %p106
        %p268 = pneg %p103
        %p269 = pneg %p127
        %p270 = pneg %p124
        %p271 = pneg %p148
        %p272 = pneg %p145
        %p273 = pneg %p169
        %p274 = pneg %p166
        %p275 = pneg %p197
        %p276 = pneg %p194
        %s277 = sand.u32 %s184, 1
        %s278 = scalar_lea.sflag [#allocation3], %s277
        %s279 = sand.u32 %s184, 1
        %s280 = smul.addr %s279, 2
        %s281 = scalar_lea.vmem [#allocation2], %s280
        %s282 = sadd.s32 %s26, %s27
        %s283 = smul.u32 8, %s282
        %p284 = scmp.lt.s32.totalorder %s25, 1
        %s285 = scalar_select %p284, %s25, 1
        %p286 = scmp.lt.s32.totalorder %s283, 7
        %s287 = scalar_select %p286, %s283, 7
        %s288 = smul.addr %s285, 8
        %s289 = sadd.s32 %s287, %s288
        %s290 = smul.addr %s289, 8
        %s291 = scalar_lea.vmem %s0, %s290
        %s292 = sadd.s32 %s26, %s27
        %s293 = smul.u32 8, %s292
        %v295 = vld [vmem:[%s291] sm:$0xff]
        %v296 = vld [vmem:[%s291 + $0x8] sm:$0xff]
        %v297 = vld [vmem:[%s291 + $0x10] sm:$0xff]
        %v298 = vld [vmem:[%s291 + $0x18] sm:$0xff]
        %v299 = vld [vmem:[%s291 + $0x20] sm:$0xff]
        %v300 = vld [vmem:[%s291 + $0x28] sm:$0xff]
        %v301 = vld [vmem:[%s291 + $0x30] sm:$0xff]
        %v302 = vld [vmem:[%s291 + $0x38] sm:$0xff]
        %v303 = vld [vmem:[%s1] sm:$0x1]
        %305 = vset.pattern.permute.xlu0 0
        %306 = vperm.xlu0 %305, %v295
        %v307 = vpop.permute.xlu0 %306
        %310 = vset.pattern.permute.xlu0 0
        %311 = vperm.xlu0 %310, %v296
        %v312 = vpop.permute.xlu0 %311
        %315 = vset.pattern.permute.xlu0 0
        %316 = vperm.xlu0 %315, %v297
        %v317 = vpop.permute.xlu0 %316
        %320 = vset.pattern.permute.xlu0 0
        %321 = vperm.xlu0 %320, %v298
        %v322 = vpop.permute.xlu0 %321
        %325 = vset.pattern.permute.xlu0 0
        %326 = vperm.xlu0 %325, %v299
        %v327 = vpop.permute.xlu0 %326
        %330 = vset.pattern.permute.xlu0 0
        %331 = vperm.xlu0 %330, %v300
        %v332 = vpop.permute.xlu0 %331
        %335 = vset.pattern.permute.xlu0 0
        %336 = vperm.xlu0 %335, %v301
        %v337 = vpop.permute.xlu0 %336
        %340 = vset.pattern.permute.xlu0 0
        %341 = vperm.xlu0 %340, %v302
        %v342 = vpop.permute.xlu0 %341
        %v344 = vlaneseq
        %v345 = vshrl.u32 %v344, 7
        %v346 = vsub.s32 0, %v345
        %v347 = vrot.slane %v303, %v346
        %v348 = vmul.f32 %v307, %v347
        %v349 = vmul.f32 %v312, %v347
        %v350 = vmul.f32 %v317, %v347
        %v351 = vmul.f32 %v322, %v347
        %v352 = vmul.f32 %v327, %v347
        %v353 = vmul.f32 %v332, %v347
        %v354 = vmul.f32 %v337, %v347
        %v355 = vmul.f32 %v342, %v347
        %v356 = vld [vmem:[%s1 + $0x1] sm:$0x1]
        %357 = vset.pattern.permute.xlu0 1
        %358 = vperm.xlu0 %357, %v295
        %v359 = vpop.permute.xlu0 %358
        %361 = vset.pattern.permute.xlu0 1
        %362 = vperm.xlu0 %361, %v296
        %v363 = vpop.permute.xlu0 %362
        %365 = vset.pattern.permute.xlu0 1
        %366 = vperm.xlu0 %365, %v297
        %v367 = vpop.permute.xlu0 %366
        %369 = vset.pattern.permute.xlu0 1
        %370 = vperm.xlu0 %369, %v298
        %v371 = vpop.permute.xlu0 %370
        %373 = vset.pattern.permute.xlu0 1
        %374 = vperm.xlu0 %373, %v299
        %v375 = vpop.permute.xlu0 %374
        %377 = vset.pattern.permute.xlu0 1
        %378 = vperm.xlu0 %377, %v300
        %v379 = vpop.permute.xlu0 %378
        %381 = vset.pattern.permute.xlu0 1
        %382 = vperm.xlu0 %381, %v301
        %v383 = vpop.permute.xlu0 %382
        %385 = vset.pattern.permute.xlu0 1
        %386 = vperm.xlu0 %385, %v302
        %v387 = vpop.permute.xlu0 %386
        %v389 = vlaneseq
        %v390 = vshrl.u32 %v389, 7
        %v391 = vsub.s32 0, %v390
        %v392 = vrot.slane %v356, %v391
        %v393 = vmul.f32 %v359, %v392
        %v394 = vmul.f32 %v363, %v392
        %v395 = vmul.f32 %v367, %v392
        %v396 = vmul.f32 %v371, %v392
        %v397 = vmul.f32 %v375, %v392
        %v398 = vmul.f32 %v379, %v392
        %v399 = vmul.f32 %v383, %v392
        %v400 = vmul.f32 %v387, %v392
        %v401 = vadd.f32 %v348, %v393
        %v402 = vadd.f32 %v349, %v394
        %v403 = vadd.f32 %v350, %v395
        %v404 = vadd.f32 %v351, %v396
        %v405 = vadd.f32 %v352, %v397
        %v406 = vadd.f32 %v353, %v398
        %v407 = vadd.f32 %v354, %v399
        %v408 = vadd.f32 %v355, %v400
        %v409 = vld [vmem:[%s1 + $0x2] sm:$0x1]
        %410 = vset.pattern.permute.xlu0 2
        %411 = vperm.xlu0 %410, %v295
        %v412 = vpop.permute.xlu0 %411
        %414 = vset.pattern.permute.xlu0 2
        %415 = vperm.xlu0 %414, %v296
        %v416 = vpop.permute.xlu0 %415
        %418 = vset.pattern.permute.xlu0 2
        %419 = vperm.xlu0 %418, %v297
        %v420 = vpop.permute.xlu0 %419
        %422 = vset.pattern.permute.xlu0 2
        %423 = vperm.xlu0 %422, %v298
        %v424 = vpop.permute.xlu0 %423
        %426 = vset.pattern.permute.xlu0 2
        %427 = vperm.xlu0 %426, %v299
        %v428 = vpop.permute.xlu0 %427
        %430 = vset.pattern.permute.xlu0 2
        %431 = vperm.xlu0 %430, %v300
        %v432 = vpop.permute.xlu0 %431
        %434 = vset.pattern.permute.xlu0 2
        %435 = vperm.xlu0 %434, %v301
        %v436 = vpop.permute.xlu0 %435
        %438 = vset.pattern.permute.xlu0 2
        %439 = vperm.xlu0 %438, %v302
        %v440 = vpop.permute.xlu0 %439
        %v442 = vlaneseq
        %v443 = vshrl.u32 %v442, 7
        %v444 = vsub.s32 0, %v443
        %v445 = vrot.slane %v409, %v444
        %v446 = vmul.f32 %v412, %v445
        %v447 = vmul.f32 %v416, %v445
        %v448 = vmul.f32 %v420, %v445
        %v449 = vmul.f32 %v424, %v445
        %v450 = vmul.f32 %v428, %v445
        %v451 = vmul.f32 %v432, %v445
        %v452 = vmul.f32 %v436, %v445
        %v453 = vmul.f32 %v440, %v445
        %v454 = vadd.f32 %v401, %v446
        %v455 = vadd.f32 %v402, %v447
        %v456 = vadd.f32 %v403, %v448
        %v457 = vadd.f32 %v404, %v449
        %v458 = vadd.f32 %v405, %v450
        %v459 = vadd.f32 %v406, %v451
        %v460 = vadd.f32 %v407, %v452
        %v461 = vadd.f32 %v408, %v453
        %v462 = vld [vmem:[%s2] sm:$0x1]
        %v464 = vlaneseq
        %v465 = vshrl.u32 %v464, 7
        %v466 = vsub.s32 0, %v465
        %v467 = vrot.slane %v462, %v466
        %v469 = vmul.f32 %v454, %v467
        %v470 = vmul.f32 %v455, %v467
        %v471 = vmul.f32 %v456, %v467
        %v472 = vmul.f32 %v457, %v467
        %v473 = vmul.f32 %v458, %v467
        %v474 = vmul.f32 %v459, %v467
        %v475 = vmul.f32 %v460, %v467
        %v476 = vmul.f32 %v461, %v467
        %v477 = vld [vmem:[%s3] sm:$0x1]
        %v479 = vlaneseq
        %v480 = vshrl.u32 %v479, 7
        %v481 = vsub.s32 0, %v480
        %v482 = vrot.slane %v477, %v481
        %v484 = vadd.f32 %v469, %v482
        %v485 = vadd.f32 %v470, %v482
        %v486 = vadd.f32 %v471, %v482
        %v487 = vadd.f32 %v472, %v482
        %v488 = vadd.f32 %v473, %v482
        %v489 = vadd.f32 %v474, %v482
        %v490 = vadd.f32 %v475, %v482
        %v491 = vadd.f32 %v476, %v482
        %v492 = vmax.f32 %v484, 0.0
        %v493 = vmax.f32 %v485, 0.0
        %v494 = vmax.f32 %v486, 0.0
        %v495 = vmax.f32 %v487, 0.0
        %v496 = vmax.f32 %v488, 0.0
        %v497 = vmax.f32 %v489, 0.0
        %v498 = vmax.f32 %v490, 0.0
        %v499 = vmax.f32 %v491, 0.0
        %v500 = vpack.c.bf16 %v493, %v492
        %v501 = vpack.c.bf16 %v495, %v494
        %v502 = vpack.c.bf16 %v497, %v496
        %v503 = vpack.c.bf16 %v499, %v498
        %v504 = vld [vmem:[%s4] sm:$0xff]
        %v505 = vld [vmem:[%s4 + $0x8] sm:$0xff]
        %v506 = vld [vmem:[%s4 + $0x10] sm:$0xff]
        %v507 = vld [vmem:[%s4 + $0x18] sm:$0xff]
        %v508 = vld [vmem:[%s4 + $0x20] sm:$0xff]
        %v509 = vld [vmem:[%s4 + $0x28] sm:$0xff]
        %v510 = vld [vmem:[%s4 + $0x30] sm:$0xff]
        %v511 = vld [vmem:[%s4 + $0x38] sm:$0xff]
        %v512 = vld [vmem:[%s4 + $0x40] sm:$0xff]
        %v513 = vld [vmem:[%s4 + $0x48] sm:$0xff]
        %v514 = vld [vmem:[%s4 + $0x50] sm:$0xff]
        %v515 = vld [vmem:[%s4 + $0x58] sm:$0xff]
        %v516 = vld [vmem:[%s4 + $0x60] sm:$0xff]
        %v517 = vld [vmem:[%s4 + $0x68] sm:$0xff]
        %v518 = vld [vmem:[%s4 + $0x70] sm:$0xff]
        %v519 = vld [vmem:[%s4 + $0x78] sm:$0xff]
        %v520 = vld [vmem:[%s5] sm:$0x3]
        %v522 = vlaneseq
        %v523 = vshrl.u32 %v522, 7
        %v524 = vsub.s32 0, %v523
        %v525 = vrot.slane %v520, %v524
        %v526 = vlaneseq
        %v527 = vshrl.u32 %v526, 7
        %v528 = vsub.s32 1, %v527
        %v529 = vrot.slane %v520, %v528
        %v548 = vunpack.c.l.b16 %v504
        %v549 = vunpack.c.h.b16 %v504
        %v550 = vunpack.c.l.b16 %v505
        %v551 = vunpack.c.h.b16 %v505
        %v552 = vunpack.c.l.b16 %v506
        %v553 = vunpack.c.h.b16 %v506
        %v554 = vunpack.c.l.b16 %v507
        %v555 = vunpack.c.h.b16 %v507
        %v556 = vunpack.c.l.b16 %v508
        %v557 = vunpack.c.h.b16 %v508
        %v558 = vunpack.c.l.b16 %v509
        %v559 = vunpack.c.h.b16 %v509
        %v560 = vunpack.c.l.b16 %v510
        %v561 = vunpack.c.h.b16 %v510
        %v562 = vunpack.c.l.b16 %v511
        %v563 = vunpack.c.h.b16 %v511
        %v564 = vunpack.c.l.b16 %v512
        %v565 = vunpack.c.h.b16 %v512
        %v566 = vunpack.c.l.b16 %v513
        %v567 = vunpack.c.h.b16 %v513
        %v568 = vunpack.c.l.b16 %v514
        %v569 = vunpack.c.h.b16 %v514
        %v570 = vunpack.c.l.b16 %v515
        %v571 = vunpack.c.h.b16 %v515
        %v572 = vunpack.c.l.b16 %v516
        %v573 = vunpack.c.h.b16 %v516
        %v574 = vunpack.c.l.b16 %v517
        %v575 = vunpack.c.h.b16 %v517
        %v576 = vunpack.c.l.b16 %v518
        %v577 = vunpack.c.h.b16 %v518
        %v578 = vunpack.c.l.b16 %v519
        %v579 = vunpack.c.h.b16 %v519
        %v580 = vpack.c.b16 %v550, %v548
        %v581 = vpack.c.b16 %v551, %v549
        %v582 = vpack.c.b16 %v554, %v552
        %v583 = vpack.c.b16 %v555, %v553
        %v584 = vpack.c.b16 %v558, %v556
        %v585 = vpack.c.b16 %v559, %v557
        %v586 = vpack.c.b16 %v562, %v560
        %v587 = vpack.c.b16 %v563, %v561
        %v588 = vpack.c.b16 %v566, %v564
        %v589 = vpack.c.b16 %v567, %v565
        %v590 = vpack.c.b16 %v570, %v568
        %v591 = vpack.c.b16 %v571, %v569
        %v592 = vpack.c.b16 %v574, %v572
        %v593 = vpack.c.b16 %v575, %v573
        %v594 = vpack.c.b16 %v578, %v576
        %v595 = vpack.c.b16 %v579, %v577
        %612 = vmatprep.subr.bf16.mxu0 %v581
        %613 = vmatpush1.bf16.msra.mxu0 %v580
        %614 = vmatprep.subr.bf16.mxu0 %v583
        %615 = vmatpush1.bf16.msra.mxu0 %v582
        %616 = vmatprep.subr.bf16.mxu0 %v585
        %617 = vmatpush1.bf16.msra.mxu0 %v584
        %618 = vmatprep.subr.bf16.mxu0 %v587
        %619 = vmatpush1.bf16.msra.mxu0 %v586
        %620 = vmatprep.subr.bf16.mxu0 %v589
        %621 = vmatpush1.bf16.msra.mxu0 %v588
        %622 = vmatprep.subr.bf16.mxu0 %v591
        %623 = vmatpush1.bf16.msra.mxu0 %v590
        %624 = vmatprep.subr.bf16.mxu0 %v593
        %625 = vmatpush1.bf16.msra.mxu0 %v592
        %626 = vmatprep.subr.bf16.mxu0 %v595
        %627 = vmatpush1.bf16.msra.mxu0 %v594
        %628 = vmatprep.subr.bf16.mxu0 0
        %629 = vmatpush1.bf16.msra.mxu0 0
        %630 = vmatprep.subr.bf16.mxu0 0
        %631 = vmatpush1.bf16.msra.mxu0 0
        %632 = vmatprep.subr.bf16.mxu0 0
        %633 = vmatpush1.bf16.msra.mxu0 0
        %634 = vmatprep.subr.bf16.mxu0 0
        %635 = vmatpush1.bf16.msra.mxu0 0
        %636 = vmatprep.subr.bf16.mxu0 0
        %637 = vmatpush1.bf16.msra.mxu0 0
        %638 = vmatprep.subr.bf16.mxu0 0
        %639 = vmatpush1.bf16.msra.mxu0 0
        %640 = vmatprep.subr.bf16.mxu0 0
        %641 = vmatpush1.bf16.msra.mxu0 0
        %642 = vmatprep.subr.bf16.mxu0 0
        %643 = vmatpush1.bf16.msra.mxu0 0
        %644 = vmatprep.mubr.bf16.mxu0 0
        %645 = vmatmul.mubr.bf16.gmra.mrb[0].mxu0 %v500
        %v646 = vpop.f32.mrb[0].mxu0
        %v647 = vadd.f32 %v525, %v646
        %v648 = vpop.f32.mrb[0].mxu0
        %v649 = vadd.f32 %v529, %v648
        %v650 = vpop.f32.mrb[0].mxu0
        %v651 = vadd.f32 %v525, %v650
        %v652 = vpop.f32.mrb[0].mxu0
        %v653 = vadd.f32 %v529, %v652
        %654 = vmatprep.mubr.bf16.mxu0 0
        %655 = vmatmul.mubr.bf16.gmra.mrb[0].mxu0 %v501
        %v656 = vpop.f32.mrb[0].mxu0
        %v657 = vadd.f32 %v525, %v656
        %v658 = vpop.f32.mrb[0].mxu0
        %v659 = vadd.f32 %v529, %v658
        %v660 = vpop.f32.mrb[0].mxu0
        %v661 = vadd.f32 %v525, %v660
        %v662 = vpop.f32.mrb[0].mxu0
        %v663 = vadd.f32 %v529, %v662
        %664 = vmatprep.mubr.bf16.mxu0 0
        %665 = vmatmul.mubr.bf16.gmra.mrb[0].mxu0 %v502
        %v666 = vpop.f32.mrb[0].mxu0
        %v667 = vadd.f32 %v525, %v666
        %v668 = vpop.f32.mrb[0].mxu0
        %v669 = vadd.f32 %v529, %v668
        %v670 = vpop.f32.mrb[0].mxu0
        %v671 = vadd.f32 %v525, %v670
        %v672 = vpop.f32.mrb[0].mxu0
        %v673 = vadd.f32 %v529, %v672
        %674 = vmatprep.mubr.bf16.mxu0 0
        %675 = vmatmul.mubr.bf16.gmra.mrb[0].mxu0 %v503
        %v676 = vpop.f32.mrb[0].mxu0
        %v677 = vadd.f32 %v525, %v676
        %v678 = vpop.f32.mrb[0].mxu0
        %v679 = vadd.f32 %v529, %v678
        %v680 = vpop.f32.mrb[0].mxu0
        %v681 = vadd.f32 %v525, %v680
        %v682 = vpop.f32.mrb[0].mxu0
        %v683 = vadd.f32 %v529, %v682
        %684 = vdwg.mxu0
        %p685 = scmp.eq.s32.totalorder %s27, 0
        // Predicated region
        $region45: #{tpu_custom_call.1} parent=43 // pred_check
          %p686 = pneg %p685
        $region46: #{tpu_custom_call.1} parent=43 // pred_check_branch
          %688 = sbr.rel (%p686) target = $region48
        $region47: #{tpu_custom_call.1} parent=43 // pred_region
          %v689 = vlaneseq
          %vm690 = vcmp.ge.s32.totalorder %v689, 0
          %vm691 = vcmp.lt.s32.totalorder %v689, 256
          %vm692 = vmand %vm690, %vm691
          %693 = vst.msk [vmem:[%s281] sm:$0x3] %vm692, -inf
        $region48: #{tpu_custom_call.1} parent=43 // pred_fallthru
          _
        %v694 = vld [vmem:[%s281] sm:$0x3]
        %v695 = vmax.f32 %v647, %v657
        %v696 = vmax.f32 %v651, %v661
        %v697 = vmax.f32 %v695, %v667
        %v698 = vmax.f32 %v696, %v671
        %v699 = vmax.f32 %v697, %v677
        %v700 = vmax.f32 %v698, %v681
        %v701 = vmax.f32 %v699, %v700
        %v702 = vrot.slane %v701, 4
        %v703 = vmax.f32 %v701, %v702
        %v704 = vrot.slane %v703, 2
        %v705 = vmax.f32 %v703, %v704
        %v706 = vrot.slane %v705, 1
        %v707 = vmax.f32 %v705, %v706
        %v708 = vmax.f32 %v649, %v659
        %v709 = vmax.f32 %v653, %v663
        %v710 = vmax.f32 %v708, %v669
        %v711 = vmax.f32 %v709, %v673
        %v712 = vmax.f32 %v710, %v679
        %v713 = vmax.f32 %v711, %v683
        %v714 = vmax.f32 %v712, %v713
        %v715 = vrot.slane %v714, 4
        %v716 = vmax.f32 %v714, %v715
        %v717 = vrot.slane %v716, 2
        %v718 = vmax.f32 %v716, %v717
        %v719 = vrot.slane %v718, 1
        %v720 = vmax.f32 %v718, %v719
        %v723 = vcombine.low %v707, %v720
        %v725 = vunpack.c.l.s4 1966171168
        %v726 = vunpack.c.0.s8 %v725
        %v727 = vlaneseq
        %v728 = vshrl.u32 %v727, 7
        %v729 = vsub.s32 %v726, %v728
        %v730 = vrot.slane %v723, %v729
        %v732 = vunpack.c.l.s4 1966171168
        %v733 = vunpack.c.0.s8 %v732
        %v734 = vlaneseq
        %v735 = vshrl.u32 %v734, 7
        %v736 = vsub.s32 %v733, %v735
        %v737 = vrot.slane %v730, %v736
        %v739 = vmax.f32 %v694, %v737
        %v740 = vlaneseq
        %vm741 = vcmp.ge.s32.totalorder %v740, 0
        %vm742 = vcmp.lt.s32.totalorder %v740, 256
        %vm743 = vmand %vm741, %vm742
        %744 = vst.msk [vmem:[%s281] sm:$0x3] %vm743, %v739
        %s745 = sand.u32 %s184, 1
        %s746 = scalar_lea.sflag [#allocation3], %s745
        %s747 = sand.u32 %s184, 1
        %s748 = smul.addr %s747, 2
        %s749 = scalar_lea.vmem [#allocation2], %s748
        // Predicated region
        $region49: #{tpu_custom_call.1} parent=43 // pred_check
          %p750 = pneg %p194
        $region50: #{tpu_custom_call.1} parent=43 // pred_check_branch
          %752 = sbr.rel (%p750) target = $region52
        $region51: #{tpu_custom_call.1} parent=43 // pred_region
          %s754 = ssub.s32 32, 32
          %755 = vsyncadd %s746, %s754
          %s756 = smul.addr %s26, 2
          %s757 = smul.addr %s25, 2
          %s758 = sadd.s32 %s756, %s757
          %s759 = smul.addr %s758, 16
          %s760 = scalar_lea.hbm %s6, %s759
          %s762 = sshll.u32 %s749, 4
          %s763 = int_to_ptr.vmem [resolvable:$true] %s762
          %765 = dma.vmem_to_hbm [thread:$0]  %s763, 32, %s760, %s746
        $region52: #{tpu_custom_call.1} parent=43 // pred_fallthru
          _
      $region44: #{tpu_custom_call.1} parent=5 // pred_fallthru
        _
      %p766 = scmp.le.s32.totalorder 2, %s15
      // Predicated region
      $region53: #{tpu_custom_call.1} parent=5 // pred_check
        %p767 = pneg %p766
      $region54: #{tpu_custom_call.1} parent=5 // pred_check_branch
        %769 = sbr.rel (%p767) target = $region56
      $region55: #{tpu_custom_call.1} parent=5 // pred_region
        %s770 = ssub.s32 %s15, 2
        // Predicated region
        $region57: #{tpu_custom_call.1} parent=55 // pred_check
          %p771 = pneg %p200
        $region58: #{tpu_custom_call.1} parent=55 // pred_check_branch
          %773 = sbr.rel (%p771) target = $region60
        $region59: #{tpu_custom_call.1} parent=55 // pred_region
          %s774 = sand.u32 %s185, 1
          %s775 = scalar_lea.sflag [#allocation3], %s774
          %s776 = sand.u32 %s185, 1
          %s777 = smul.addr %s776, 2
          %s778 = scalar_lea.vmem [#allocation2], %s777
          %779 = dma.done %s775, 32
        $region60: #{tpu_custom_call.1} parent=55 // pred_fallthru
          _
      $region56: #{tpu_custom_call.1} parent=5 // pred_fallthru
        _
    $region6: #{tpu_custom_call.1} parent=1 // loop_footer
      %s19 = sadd.s32 1, %s15
    $region7: #{tpu_custom_call.1} parent=1 // loop_footer_branch
      %14 = sbr.rel target = $region3
    $region8: #{tpu_custom_call.1} parent=1 // loop_exit
      _
    %780 = vsyncpa [#allocation3], 1
    %s781 = scalar_lea.sflag [#allocation3], 1
    %782 = vsyncpa %s781, 1

</llo_original>
